<compile_context>
chip_gen: v6e
topology: v6e:2x2x1
jax: 0.10.0
libtpu: 0.0.40
codegen_flags: <defaults>
</compile_context>

<pallas_src>
import jax
import jax.numpy as jnp
from jax.experimental import pallas as pl
from jax.experimental.pallas import tpu as pltpu

EPS = 1e-5  # nn.BatchNorm2d default eps


def _round_up(x, m):
    return ((x + m - 1) // m) * m


def _linear_head_kernel(x_ref, w1_ref, b1_ref, w2_ref, b2_ref, out_ref):
    """One batch-block of the head.

    x_ref  : (bn, C, HW)  raw backbone features (free view of NCHW).
    w1_ref : (C, hidden)  linear_1 weight (transposed); BN scale and the 1/HW
                          pooling factor are pre-folded host-side.
    b1_ref : (1, hidden)  linear_1 bias, BN shift pre-folded (f32).
    w2_ref : (hidden, 10) linear_2 weight (transposed).
    b2_ref : (1, 10)      linear_2 bias (f32).
    out_ref: (bn, 10)
    """
    # Sum-pool over the spatial (lane) axis: XLU reduce, f32 accumulate.
    # The 1/HW normalization lives in w1_ref, so no extra VPU multiply here.
    pooled = jnp.sum(x_ref[...], axis=-1, dtype=jnp.float32)              # (bn, C)

    # Dropout(p=0.2) is identity at inference.
    # TODO(synk): training-mode dropout would use pltpu.prng_random_bits.

    # linear_1 (+ folded BN + folded 1/HW) + ReLU, then linear_2.
    h = jnp.dot(pooled, w1_ref[...], preferred_element_type=jnp.float32)
    h = jnp.maximum(h + b1_ref[...], 0.0)                                  # (bn, hidden)
    out = jnp.dot(h, w2_ref[...], preferred_element_type=jnp.float32)
    out_ref[...] = (out + b2_ref[...]).astype(out_ref.dtype)               # (bn, 10)


def _per_buffer_budget_bytes():
    """Per-buffer VMEM budget for the x stream; v7x-safe (64 MiB physical) by
    default, relaxed only on chips reporting large VMEM (v5e/v6e: 128 MiB)."""
    budget = 8 << 20
    try:
        info = pltpu.get_tpu_info()
        if getattr(info, "vmem_capacity_bytes", 0) >= (96 << 20):
            budget = 16 << 20
    except Exception:
        pass
    return budget


def _pick_batch_block(n, c, hw, itemsize, budget_bytes):
    """Largest 8-aligned batch block whose *padded* x tile fits the per-buffer
    budget, capped so the grid has >= 2 steps whenever N >= 16 (so both v7x
    TensorCores get work). No whole-batch fallback for odd N."""
    # Padded VMEM footprint of one batch element of the (bn, C, HW) tile:
    # last dim pads to 128 lanes, second-to-last to 8 sublanes.
    per_row = _round_up(c, 8) * _round_up(hw, 128) * itemsize
    if n <= 8:
        return n                                   # single full-extent block
    blk = max(8, (int(budget_bytes // per_row) // 8) * 8)
    blk = min(blk, (n // 8) * 8)
    if n >= 16:
        half = max(8, (((n + 1) // 2) // 8) * 8)   # guarantee >= 2 grid steps
        blk = min(blk, half)
    return int(blk)


def _vmem_limit_bytes(blk, c, hw, hidden, nc, x_itemsize, w_itemsize):
    """Explicit scoped-VMEM limit from padded tile footprints (x and output
    double-buffered, weights conservatively counted twice) + compiler slack."""
    x_tile = blk * _round_up(c, 8) * _round_up(hw, 128) * x_itemsize
    weights = (_round_up(c, 8) * _round_up(hidden, 128) * w_itemsize      # w1
               + 8 * _round_up(hidden, 128) * 4                           # b1 (f32)
               + _round_up(hidden, 8) * _round_up(nc, 128) * w_itemsize   # w2
               + 8 * _round_up(nc, 128) * 4)                              # b2 (f32)
    out_tile = _round_up(blk, 8) * _round_up(nc, 128) * 4
    total = 2 * x_tile + 2 * weights + 2 * out_tile + (4 << 20)
    return int(min(max(total, 16 << 20), 112 << 20))


def linear_head(feature_nchw, params, batch_block=None):
    """Forward of the Linear head on a backbone feature map.

    feature_nchw: (N, C, H, W) feature map from the (external) backbone.
    params: (gamma, beta, running_mean, running_var, w1, b1, w2, b2)
            w1: (C, hidden), w2: (hidden, 10)  (PyTorch weights transposed);
            1-D params stored as (1, dim).
    """
    n, c, h, w = feature_nchw.shape
    hw = h * w
    gamma, beta, mean, var, w1, b1, w2, b2 = params
    hidden = w1.shape[1]
    num_classes = w2.shape[1]
    assert w1.shape == (c, hidden) and w2.shape == (hidden, num_classes)

    # ---- Host-side folding (algebraically exact):
    #   BN(x) = x*scale + shift;  pool and dropout(eval) are linear, so
    #   mean_hw(BN(x)) @ w1 + b1 == sum_hw(x) @ ((scale/HW)*w1) + (shift @ w1 + b1)
    f32 = jnp.float32
    scale = gamma[0].astype(f32) * jax.lax.rsqrt(var[0].astype(f32) + EPS)   # (C,)
    shift = beta[0].astype(f32) - mean[0].astype(f32) * scale                # (C,)
    w1_f = (w1.astype(f32) * (scale * (1.0 / hw))[:, None]).astype(feature_nchw.dtype)
    b1_f = (b1[0].astype(f32) + shift @ w1.astype(f32))[None, :]             # (1, hidden) f32
    w2_f = w2.astype(feature_nchw.dtype)                                     # (hidden, 10)
    b2_f = b2.astype(f32).reshape(1, num_classes)                            # (1, 10) f32

    # ---- (N, C, HW): free contiguous view of NCHW -> no extra HBM pass.
    x = feature_nchw.reshape(n, c, hw)

    itemsize = jnp.dtype(x.dtype).itemsize
    w_itemsize = jnp.dtype(w1_f.dtype).itemsize
    if batch_block is None:
        batch_block = _pick_batch_block(n, c, hw, itemsize, _per_buffer_budget_bytes())
    batch_block = int(min(batch_block, n))
    grid = (pl.cdiv(n, batch_block),)   # last block may be partial; Pallas masks it

    vmem_limit = _vmem_limit_bytes(batch_block, c, hw, hidden, num_classes,
                                   itemsize, w_itemsize)

    cost = pl.CostEstimate(
        flops=n * c * hw + 2 * n * c * hidden + 2 * n * hidden * num_classes,
        transcendentals=0,
        bytes_accessed=(n * c * hw * itemsize
                        + (w1_f.size + w2_f.size) * w_itemsize
                        + (b1_f.size + b2_f.size) * 4
                        + n * num_classes * 4),
    )

    grid_spec = pltpu.PrefetchScalarGridSpec(
        num_scalar_prefetch=0,
        grid=grid,
        in_specs=[
            pl.BlockSpec((batch_block, c, hw), lambda i: (i, 0, 0)),   # feature block
            pl.BlockSpec((c, hidden), lambda i: (0, 0)),               # w1 (resident)
            pl.BlockSpec((1, hidden), lambda i: (0, 0)),               # b1 (resident)
            pl.BlockSpec((hidden, num_classes), lambda i: (0, 0)),     # w2 (resident)
            pl.BlockSpec((1, num_classes), lambda i: (0, 0)),          # b2 (resident)
        ],
        out_specs=pl.BlockSpec((batch_block, num_classes), lambda i: (i, 0)),
    )

    return pl.pallas_call(
        _linear_head_kernel,
        out_shape=jax.ShapeDtypeStruct((n, num_classes), jnp.float32),
        grid_spec=grid_spec,
        compiler_params=pltpu.CompilerParams(
            dimension_semantics=("parallel",),   # independent batch blocks (2 TCs on v7x)
            vmem_limit_bytes=vmem_limit,
        ),
        cost_estimate=cost,
    )(x, w1_f, b1_f, w2_f, b2_f)


def reference(feature_nchw, params):
    """Pure-JAX reference with the *unfolded* BN math (matches the nn.Module)."""
    gamma, beta, mean, var, w1, b1, w2, b2 = params
    x = feature_nchw.astype(jnp.float32)
    inv_std = jax.lax.rsqrt(var[0] + EPS)
    normed = (x - mean[0][None, :, None, None]) * (gamma[0] * inv_std)[None, :, None, None] \
             + beta[0][None, :, None, None]
    pooled = jnp.mean(normed, axis=(2, 3))
    h = jnp.maximum(pooled @ w1 + b1[0], 0.0)
    return h @ w2 + b2[0]


if __name__ == "__main__":
    # Small synthetic shapes consistent with the module:
    # backbone_out_dims = (C, H, W) = (32, 8, 8), hidden_dims = 64, batch = 16.
    N, C, H, W = 16, 32, 8, 8
    HIDDEN, NUM_CLASSES = 64, 10

    key = jax.random.PRNGKey(0)
    k_feat, k_g, k_b, k_m, k_v, k_w1, k_b1, k_w2, k_b2 = jax.random.split(key, 9)

    feature = jax.random.normal(k_feat, (N, C, H, W), dtype=jnp.float32)

    # Deterministic parameter initialization (shapes follow the nn.Module).
    gamma = 1.0 + 0.1 * jax.random.normal(k_g, (1, C), dtype=jnp.float32)
    beta = 0.1 * jax.random.normal(k_b, (1, C), dtype=jnp.float32)
    running_mean = 0.1 * jax.random.normal(k_m, (1, C), dtype=jnp.float32)
    running_var = jnp.abs(1.0 + 0.1 * jax.random.normal(k_v, (1, C), dtype=jnp.float32))
    w1 = 0.05 * jax.random.normal(k_w1, (C, HIDDEN), dtype=jnp.float32)      # linear_1.weight.T
    b1 = 0.05 * jax.random.normal(k_b1, (1, HIDDEN), dtype=jnp.float32)
    w2 = 0.05 * jax.random.normal(k_w2, (HIDDEN, NUM_CLASSES), dtype=jnp.float32)  # linear_2.weight.T
    b2 = 0.05 * jax.random.normal(k_b2, (1, NUM_CLASSES), dtype=jnp.float32)

    params = (gamma, beta, running_mean, running_var, w1, b1, w2, b2)

    ref = reference(feature, params)

    # Explicit 8-row batch block -> 2-step pipelined grid.
    out = jax.block_until_ready(linear_head(feature, params, batch_block=8))
    assert out.shape == (N, NUM_CLASSES)
    assert jnp.allclose(out, ref, atol=1e-4, rtol=1e-4)

    # Auto-picked batch block: also >= 2 grid steps (both v7x TensorCores busy).
    out_auto = jax.block_until_ready(linear_head(feature, params))
    assert jnp.allclose(out_auto, ref, atol=1e-4, rtol=1e-4)

    print("KERNEL_OK")
</pallas_src>

<mosaic_0001>
module attributes {stable_mosaic.version = 11 : i64} {
  func.func @_linear_head_kernel(%arg0: i32, %arg1: memref<8x32x64xf32, #tpu.memory_space<vmem>>, %arg2: memref<32x64xf32, #tpu.memory_space<vmem>>, %arg3: memref<1x64xf32, #tpu.memory_space<vmem>>, %arg4: memref<64x10xf32, #tpu.memory_space<vmem>>, %arg5: memref<1x10xf32, #tpu.memory_space<vmem>>, %arg6: memref<8x10xf32, #tpu.memory_space<vmem>>) attributes {dimension_semantics = [#tpu.dimension_semantics<parallel>], iteration_bounds = array<i64: 2>, scalar_prefetch = 0 : i64, scratch_operands = 0 : i64, tpu.core_type = #tpu.core_type<tc>, window_params = [{transform_indices = @transform_0, window_bounds = array<i64: 8, 32, 64>}, {pipeline_mode = #tpu.pipeline_mode<synchronous>, transform_indices = @transform_1, window_bounds = array<i64: 32, 64>}, {pipeline_mode = #tpu.pipeline_mode<synchronous>, transform_indices = @transform_2, window_bounds = array<i64: 1, 64>}, {pipeline_mode = #tpu.pipeline_mode<synchronous>, transform_indices = @transform_3, window_bounds = array<i64: 64, 10>}, {pipeline_mode = #tpu.pipeline_mode<synchronous>, transform_indices = @transform_4, window_bounds = array<i64: 1, 10>}, {transform_indices = @transform_5, window_bounds = array<i64: 8, 10>}]} {
    %c0 = arith.constant 0 : index
    %c0_0 = arith.constant 0 : index
    %c0_1 = arith.constant 0 : index
    %0 = vector.load %arg1[%c0, %c0_0, %c0_1] : memref<8x32x64xf32, #tpu.memory_space<vmem>>, vector<8x32x64xf32>
    %cst = arith.constant dense<0.000000e+00> : vector<8x32xf32>
    %1 = vector.multi_reduction <add>, %0, %cst [2] : vector<8x32x64xf32> to vector<8x32xf32>
    %c0_2 = arith.constant 0 : index
    %c0_3 = arith.constant 0 : index
    %2 = vector.load %arg2[%c0_2, %c0_3] : memref<32x64xf32, #tpu.memory_space<vmem>>, vector<32x64xf32>
    %cst_4 = arith.constant dense<0.000000e+00> : vector<8x64xf32>
    %3 = tpu.matmul %1, %2, %cst_4 {dimension_numbers = #tpu.dot_dimension_numbers<[1], [0], [0], [1], [0, 0, 1, 1], [], []>} : vector<8x32xf32>, vector<32x64xf32>, vector<8x64xf32> -> vector<8x64xf32>
    %c0_5 = arith.constant 0 : index
    %c0_6 = arith.constant 0 : index
    %4 = vector.load %arg3[%c0_5, %c0_6] : memref<1x64xf32, #tpu.memory_space<vmem>>, vector<1x64xf32>
    %5 = vector.broadcast %4 : vector<1x64xf32> to vector<8x64xf32>
    %6 = arith.addf %3, %5 : vector<8x64xf32>
    %cst_7 = arith.constant 0.000000e+00 : f32
    %7 = vector.broadcast %cst_7 : f32 to vector<8x64xf32>
    %8 = arith.maximumf %6, %7 : vector<8x64xf32>
    %c0_8 = arith.constant 0 : index
    %c0_9 = arith.constant 0 : index
    %9 = vector.load %arg4[%c0_8, %c0_9] : memref<64x10xf32, #tpu.memory_space<vmem>>, vector<64x10xf32>
    %cst_10 = arith.constant dense<0.000000e+00> : vector<8x10xf32>
    %10 = tpu.matmul %8, %9, %cst_10 {dimension_numbers = #tpu.dot_dimension_numbers<[1], [0], [0], [1], [0, 0, 1, 1], [], []>} : vector<8x64xf32>, vector<64x10xf32>, vector<8x10xf32> -> vector<8x10xf32>
    %c0_11 = arith.constant 0 : index
    %c0_12 = arith.constant 0 : index
    %11 = vector.load %arg5[%c0_11, %c0_12] : memref<1x10xf32, #tpu.memory_space<vmem>>, vector<1x10xf32>
    %12 = vector.broadcast %11 : vector<1x10xf32> to vector<8x10xf32>
    %13 = arith.addf %10, %12 : vector<8x10xf32>
    %c0_13 = arith.constant 0 : index
    %c0_14 = arith.constant 0 : index
    %14 = vector.load %arg6[%c0_13, %c0_14] : memref<8x10xf32, #tpu.memory_space<vmem>>, vector<8x10xf32>
    tpu.vector_store %arg6[%c0_13, %c0_14], %13 {strides = array<i32>} : memref<8x10xf32, #tpu.memory_space<vmem>>, vector<8x10xf32>,
    return
  }
  func.func @transform_0(%arg0: i32) -> (i32, i32, i32) {
    %c0_i32 = arith.constant 0 : i32
    %c0_i32_0 = arith.constant 0 : i32
    %c0_i32_1 = arith.constant 0 : i32
    return %arg0, %c0_i32, %c0_i32_0 : i32, i32, i32
  }
  func.func @transform_1(%arg0: i32) -> (i32, i32) {
    %c0_i32 = arith.constant 0 : i32
    %c0_i32_0 = arith.constant 0 : i32
    %c0_i32_1 = arith.constant 0 : i32
    return %c0_i32, %c0_i32_0 : i32, i32
  }
  func.func @transform_2(%arg0: i32) -> (i32, i32) {
    %c0_i32 = arith.constant 0 : i32
    %c0_i32_0 = arith.constant 0 : i32
    %c0_i32_1 = arith.constant 0 : i32
    return %c0_i32, %c0_i32_0 : i32, i32
  }
  func.func @transform_3(%arg0: i32) -> (i32, i32) {
    %c0_i32 = arith.constant 0 : i32
    %c0_i32_0 = arith.constant 0 : i32
    %c0_i32_1 = arith.constant 0 : i32
    return %c0_i32, %c0_i32_0 : i32, i32
  }
  func.func @transform_4(%arg0: i32) -> (i32, i32) {
    %c0_i32 = arith.constant 0 : i32
    %c0_i32_0 = arith.constant 0 : i32
    %c0_i32_1 = arith.constant 0 : i32
    return %c0_i32, %c0_i32_0 : i32, i32
  }
  func.func @transform_5(%arg0: i32) -> (i32, i32) {
    %c0_i32 = arith.constant 0 : i32
    %c0_i32_0 = arith.constant 0 : i32
    return %arg0, %c0_i32 : i32, i32
  }
}

</mosaic_0001>

<llo_original>
// kernel: tpu_custom_call.1
$region0: #{tpu_custom_call.1}
  #allocation0 [shape = 'u32[]', space=smem, size = 0x4, offset = 0x4, fixed_abs, tag = 'smem constant byte address 0x4 - core index']
  #allocation1 [shape = 'u32[144,128]{1,0:T(1,128)}', space=vmem, size = 0x12000, scoped, tag = 'internal scratch']
  %s0 = inlined_call_operand.hbm [shape: f32[16,32,64], index: 0, kind: input, shape index: {}]
  %s1 = inlined_call_operand.vmem [shape: f32[32,64], index: 1, kind: input, shape index: {}]
  %s2 = inlined_call_operand.vmem [shape: f32[1,64], index: 2, kind: input, shape index: {}]
  %s3 = inlined_call_operand.vmem [shape: f32[64,10], index: 3, kind: input, shape index: {}]
  %s4 = inlined_call_operand.vmem [shape: f32[1,10], index: 4, kind: input, shape index: {}]
  %s5 = inlined_call_operand.hbm [shape: f32[16,10], index: 5, kind: output, shape index: {}]
  %s6 = sld [smem:[#allocation0]]
  $region57: #{tpu_custom_call.1} parent=0
    _
  %s8 = ssub.s32 1, %s6
  %s9 = scalar_select 0, %s8, %s6
  $region1: #{tpu_custom_call.1} parent=0
    #allocation2 [shape = 'u8[262144]{0}', space=vmem, size = 0x40000, scoped, tag = 'input window, operand 0']
    #allocation3 [shape = 's32[2]{0}', space=sflag, size = 0x8, scoped, tag = 'scoped memory for tpu_custom_call.1']
    #allocation4 [shape = 's32[2]{0}', space=sflag, size = 0x8, scoped, tag = 'scoped memory for tpu_custom_call.1']
    #allocation5 [shape = 'u8[8192]{0}', space=vmem, size = 0x2000, scoped, tag = 'output window, operand 0']
    %10 = vsyncpa [#allocation3], 0
    %s11 = scalar_lea.sflag [#allocation3], 1
    %12 = vsyncpa %s11, 0
    %13 = vsyncpa [#allocation4], 0
    %s14 = scalar_lea.sflag [#allocation4], 1
    %15 = vsyncpa %s14, 0
    loop: start=0, step=1, limit=4
    $region2: #{tpu_custom_call.1} parent=1 // loop_pre_header
      _
    $region3: #{tpu_custom_call.1} parent=1 // loop_header
      %s17 = sphi 0, %s21
      %p18 = scmp.ge.s32.totalorder %s17, 4
      %s27 = sphi 0, %s29
      %s30 = sphi 0, %s27
      %s31 = sphi 0, %s30
      %s47 = sphi 0, %s31
      %s51 = sphi 0, %s51
      %s53 = sphi 0, %s51
      %s54 = sphi 0, %s53
      %s68 = sphi 0, %s54
      %s72 = sphi 0, %s72
      %s74 = sphi 0, %s72
      %s75 = sphi 0, %s74
      %s89 = sphi 0, %s75
      %s93 = sphi 0, %s93
      %s95 = sphi 0, %s93
      %s96 = sphi 0, %s95
      %s110 = sphi 0, %s96
      %s114 = sphi 0, %s114
      %s116 = sphi 0, %s114
      %s117 = sphi 0, %s116
      %s131 = sphi 0, %s117
      %s137 = sphi 0, %s139
      %s140 = sphi 0, %s137
      %s141 = sphi 0, %s140
      %s157 = sphi 0, %s141
    $region4: #{tpu_custom_call.1} parent=1 // loop_header_branch
      %20 = sbr.rel (%p18) target = $region8
    $region5: #{tpu_custom_call.1} parent=1 // loop_body
      %s22 = ssub.s32 %s17, 1
      %s23 = ssub.s32 %s17, 2
      %s24 = sadd.s32 %s17, 1
      %s25 = ssub.s32 %s17, %s24
      %p26 = scmp.eq.s32.totalorder %s25, 0
      %s28 = sadd.s32 %s27, 1
      %s29 = scalar_select %p26, %s27, %s28
      %p32 = pneg %p26
      %p33 = scmp.eq.s32.totalorder %s17, 1
      %p34 = por %p32, %p33
      %p35 = scmp.ne.s32.totalorder %s27, %s30
      %p36 = scmp.eq.s32.totalorder %s17, 0
      %p37 = por %p35, %p36
      %p38 = scmp.ne.s32.totalorder %s27, %s30
      %p39 = scmp.eq.s32.totalorder %s22, 1
      %p40 = por %p38, %p39
      %p41 = scmp.ne.s32.totalorder %s30, %s31
      %p42 = scmp.eq.s32.totalorder %s22, 0
      %p43 = por %p41, %p42
      %p44 = scmp.ne.s32.totalorder %s30, %s31
      %p45 = scmp.eq.s32.totalorder %s23, 1
      %p46 = por %p44, %p45
      %p48 = scmp.ne.s32.totalorder %s31, %s47
      %p49 = scmp.eq.s32.totalorder %s23, 0
      %p50 = por %p48, %p49
      %s52 = sadd.s32 %s51, 1
      %p55 = scmp.eq.s32.totalorder %s17, 1
      %p56 = scmp.ne.s32.totalorder %s51, %s53
      %p57 = scmp.eq.s32.totalorder %s17, 0
      %p58 = por %p56, %p57
      %p59 = scmp.ne.s32.totalorder %s51, %s53
      %p60 = scmp.eq.s32.totalorder %s22, 1
      %p61 = por %p59, %p60
      %p62 = scmp.ne.s32.totalorder %s53, %s54
      %p63 = scmp.eq.s32.totalorder %s22, 0
      %p64 = por %p62, %p63
      %p65 = scmp.ne.s32.totalorder %s53, %s54
      %p66 = scmp.eq.s32.totalorder %s23, 1
      %p67 = por %p65, %p66
      %p69 = scmp.ne.s32.totalorder %s54, %s68
      %p70 = scmp.eq.s32.totalorder %s23, 0
      %p71 = por %p69, %p70
      %s73 = sadd.s32 %s72, 1
      %p76 = scmp.eq.s32.totalorder %s17, 1
      %p77 = scmp.ne.s32.totalorder %s72, %s74
      %p78 = scmp.eq.s32.totalorder %s17, 0
      %p79 = por %p77, %p78
      %p80 = scmp.ne.s32.totalorder %s72, %s74
      %p81 = scmp.eq.s32.totalorder %s22, 1
      %p82 = por %p80, %p81
      %p83 = scmp.ne.s32.totalorder %s74, %s75
      %p84 = scmp.eq.s32.totalorder %s22, 0
      %p85 = por %p83, %p84
      %p86 = scmp.ne.s32.totalorder %s74, %s75
      %p87 = scmp.eq.s32.totalorder %s23, 1
      %p88 = por %p86, %p87
      %p90 = scmp.ne.s32.totalorder %s75, %s89
      %p91 = scmp.eq.s32.totalorder %s23, 0
      %p92 = por %p90, %p91
      %s94 = sadd.s32 %s93, 1
      %p97 = scmp.eq.s32.totalorder %s17, 1
      %p98 = scmp.ne.s32.totalorder %s93, %s95
      %p99 = scmp.eq.s32.totalorder %s17, 0
      %p100 = por %p98, %p99
      %p101 = scmp.ne.s32.totalorder %s93, %s95
      %p102 = scmp.eq.s32.totalorder %s22, 1
      %p103 = por %p101, %p102
      %p104 = scmp.ne.s32.totalorder %s95, %s96
      %p105 = scmp.eq.s32.totalorder %s22, 0
      %p106 = por %p104, %p105
      %p107 = scmp.ne.s32.totalorder %s95, %s96
      %p108 = scmp.eq.s32.totalorder %s23, 1
      %p109 = por %p107, %p108
      %p111 = scmp.ne.s32.totalorder %s96, %s110
      %p112 = scmp.eq.s32.totalorder %s23, 0
      %p113 = por %p111, %p112
      %s115 = sadd.s32 %s114, 1
      %p118 = scmp.eq.s32.totalorder %s17, 1
      %p119 = scmp.ne.s32.totalorder %s114, %s116
      %p120 = scmp.eq.s32.totalorder %s17, 0
      %p121 = por %p119, %p120
      %p122 = scmp.ne.s32.totalorder %s114, %s116
      %p123 = scmp.eq.s32.totalorder %s22, 1
      %p124 = por %p122, %p123
      %p125 = scmp.ne.s32.totalorder %s116, %s117
      %p126 = scmp.eq.s32.totalorder %s22, 0
      %p127 = por %p125, %p126
      %p128 = scmp.ne.s32.totalorder %s116, %s117
      %p129 = scmp.eq.s32.totalorder %s23, 1
      %p130 = por %p128, %p129
      %p132 = scmp.ne.s32.totalorder %s117, %s131
      %p133 = scmp.eq.s32.totalorder %s23, 0
      %p134 = por %p132, %p133
      %s135 = ssub.s32 %s17, %s24
      %p136 = scmp.eq.s32.totalorder %s135, 0
      %s138 = sadd.s32 %s137, 1
      %s139 = scalar_select %p136, %s137, %s138
      %p142 = pneg %p136
      %p143 = scmp.eq.s32.totalorder %s17, 1
      %p144 = por %p142, %p143
      %p145 = scmp.ne.s32.totalorder %s137, %s140
      %p146 = scmp.eq.s32.totalorder %s17, 0
      %p147 = por %p145, %p146
      %p148 = scmp.ne.s32.totalorder %s137, %s140
      %p149 = scmp.eq.s32.totalorder %s22, 1
      %p150 = por %p148, %p149
      %p151 = scmp.ne.s32.totalorder %s140, %s141
      %p152 = scmp.eq.s32.totalorder %s22, 0
      %p153 = por %p151, %p152
      %p154 = scmp.ne.s32.totalorder %s140, %s141
      %p155 = scmp.eq.s32.totalorder %s23, 1
      %p156 = por %p154, %p155
      %p158 = scmp.ne.s32.totalorder %s141, %s157
      %p159 = scmp.eq.s32.totalorder %s23, 0
      %p160 = por %p158, %p159
      %p161 = scmp.le.s32.totalorder 1, %s17
      %p162 = scmp.lt.s32.totalorder %s17, 3
      %p163 = pnand %p161, %p162
      %p164 = pneg %p163
      // Predicated region
      $region9: #{tpu_custom_call.1} parent=5 // pred_check
        _
      $region10: #{tpu_custom_call.1} parent=5 // pred_check_branch
        %166 = sbr.rel (%p163) target = $region12
      $region11: #{tpu_custom_call.1} parent=5 // pred_region
        %s167 = ssub.s32 %s17, 1
        // Predicated region
        $region13: #{tpu_custom_call.1} parent=11 // pred_check
          %p168 = pneg %p64
        $region14: #{tpu_custom_call.1} parent=11 // pred_check_branch
          %170 = sbr.rel (%p168) target = $region16
        $region15: #{tpu_custom_call.1} parent=11 // pred_region
          _
        $region16: #{tpu_custom_call.1} parent=11 // pred_fallthru
          _
        // Predicated region
        $region17: #{tpu_custom_call.1} parent=11 // pred_check
          %p171 = pneg %p85
        $region18: #{tpu_custom_call.1} parent=11 // pred_check_branch
          %173 = sbr.rel (%p171) target = $region20
        $region19: #{tpu_custom_call.1} parent=11 // pred_region
          _
        $region20: #{tpu_custom_call.1} parent=11 // pred_fallthru
          _
        // Predicated region
        $region21: #{tpu_custom_call.1} parent=11 // pred_check
          %p174 = pneg %p106
        $region22: #{tpu_custom_call.1} parent=11 // pred_check_branch
          %176 = sbr.rel (%p174) target = $region24
        $region23: #{tpu_custom_call.1} parent=11 // pred_region
          _
        $region24: #{tpu_custom_call.1} parent=11 // pred_fallthru
          _
        // Predicated region
        $region25: #{tpu_custom_call.1} parent=11 // pred_check
          %p177 = pneg %p127
        $region26: #{tpu_custom_call.1} parent=11 // pred_check_branch
          %179 = sbr.rel (%p177) target = $region28
        $region27: #{tpu_custom_call.1} parent=11 // pred_region
          _
        $region28: #{tpu_custom_call.1} parent=11 // pred_fallthru
          _
      $region12: #{tpu_custom_call.1} parent=5 // pred_fallthru
        _
      %p180 = scmp.lt.s32.totalorder %s17, 2
      // Predicated region
      $region29: #{tpu_custom_call.1} parent=5 // pred_check
        %p181 = pneg %p180
      $region30: #{tpu_custom_call.1} parent=5 // pred_check_branch
        %183 = sbr.rel (%p181) target = $region32
      $region31: #{tpu_custom_call.1} parent=5 // pred_region
        // Predicated region
        $region33: #{tpu_custom_call.1} parent=31 // pred_check
          %p184 = pneg %p37
        $region34: #{tpu_custom_call.1} parent=31 // pred_check_branch
          %186 = sbr.rel (%p184) target = $region36
        $region35: #{tpu_custom_call.1} parent=31 // pred_region
          %s187 = sand.u32 %s27, 1
          %s188 = scalar_lea.sflag [#allocation3], %s187
          %s189 = sand.u32 %s27, 1
          %s190 = smul.addr %s189, 256
          %s191 = scalar_lea.vmem [#allocation2], %s190
          %s192 = smul.u32 8, %s17
          %s194 = ssub.s32 4096, 4096
          %195 = vsyncadd %s188, %s194
          %s196 = smul.addr %s192, 4
          %s197 = smul.addr %s196, 128
          %s198 = scalar_lea.hbm %s0, %s197
          %s199 = sshll.u32 %s191, 4
          %s200 = int_to_ptr.vmem [resolvable:$true] %s199
          %205 = dma.hbm_to_vmem [thread:$0]  %s198, 4096, %s200, %s188, 128, 128, 8
        $region36: #{tpu_custom_call.1} parent=31 // pred_fallthru
          _
      $region32: #{tpu_custom_call.1} parent=5 // pred_fallthru
        _
      %p206 = scmp.le.s32.totalorder 1, %s17
      %p207 = scmp.lt.s32.totalorder %s17, 3
      %p208 = pnand %p206, %p207
      %p209 = pneg %p208
      // Predicated region
      $region37: #{tpu_custom_call.1} parent=5 // pred_check
        _
      $region38: #{tpu_custom_call.1} parent=5 // pred_check_branch
        %211 = sbr.rel (%p208) target = $region40
      $region39: #{tpu_custom_call.1} parent=5 // pred_region
        %s212 = ssub.s32 %s17, 1
        %s213 = sand.u32 %s30, 1
        %s214 = scalar_lea.sflag [#allocation3], %s213
        %s215 = sand.u32 %s30, 1
        %s216 = smul.addr %s215, 256
        %s217 = scalar_lea.vmem [#allocation2], %s216
        // Predicated region
        $region41: #{tpu_custom_call.1} parent=39 // pred_check
          %p218 = pneg %p43
        $region42: #{tpu_custom_call.1} parent=39 // pred_check_branch
          %220 = sbr.rel (%p218) target = $region44
        $region43: #{tpu_custom_call.1} parent=39 // pred_region
          %221 = dma.done %s214, 4096
        $region44: #{tpu_custom_call.1} parent=39 // pred_fallthru
          _
        %s222 = sand.u32 %s30, 1
        %s223 = scalar_lea.sflag [#allocation3], %s222
        %s224 = sand.u32 %s30, 1
        %s225 = smul.addr %s224, 256
        %s226 = scalar_lea.vmem [#allocation2], %s225
        %p227 = pneg %p43
        %p228 = pneg %p40
        %p229 = pneg %p64
        %p230 = pneg %p61
        %p231 = pneg %p85
        %p232 = pneg %p82
        %p233 = pneg %p106
        %p234 = pneg %p103
        %p235 = pneg %p127
        %p236 = pneg %p124
        %p237 = pneg %p153
        %p238 = pneg %p150
        %s239 = sand.u32 %s140, 1
        %s240 = scalar_lea.sflag [#allocation4], %s239
        %s241 = sand.u32 %s140, 1
        %s242 = smul.addr %s241, 8
        %s243 = scalar_lea.vmem [#allocation5], %s242
        %s244 = smul.u32 8, %s22
        %v245 = vld [vmem:[%s217] sm:$0xff]
        %v246 = vld [vmem:[%s217 + $0x8] sm:$0xff]
        %v247 = vld [vmem:[%s217 + $0x10] sm:$0xff]
        %v248 = vld [vmem:[%s217 + $0x18] sm:$0xff]
        %v249 = vld [vmem:[%s217 + $0x20] sm:$0xff]
        %v250 = vld [vmem:[%s217 + $0x28] sm:$0xff]
        %v251 = vld [vmem:[%s217 + $0x30] sm:$0xff]
        %v252 = vld [vmem:[%s217 + $0x38] sm:$0xff]
        %v253 = vld [vmem:[%s217 + $0x40] sm:$0xff]
        %v254 = vld [vmem:[%s217 + $0x48] sm:$0xff]
        %v255 = vld [vmem:[%s217 + $0x50] sm:$0xff]
        %v256 = vld [vmem:[%s217 + $0x58] sm:$0xff]
        %v257 = vld [vmem:[%s217 + $0x60] sm:$0xff]
        %v258 = vld [vmem:[%s217 + $0x68] sm:$0xff]
        %v259 = vld [vmem:[%s217 + $0x70] sm:$0xff]
        %v260 = vld [vmem:[%s217 + $0x78] sm:$0xff]
        %v261 = vld [vmem:[%s217 + $0x80] sm:$0xff]
        %v262 = vld [vmem:[%s217 + $0x88] sm:$0xff]
        %v263 = vld [vmem:[%s217 + $0x90] sm:$0xff]
        %v264 = vld [vmem:[%s217 + $0x98] sm:$0xff]
        %v265 = vld [vmem:[%s217 + $0xa0] sm:$0xff]
        %v266 = vld [vmem:[%s217 + $0xa8] sm:$0xff]
        %v267 = vld [vmem:[%s217 + $0xb0] sm:$0xff]
        %v268 = vld [vmem:[%s217 + $0xb8] sm:$0xff]
        %v269 = vld [vmem:[%s217 + $0xc0] sm:$0xff]
        %v270 = vld [vmem:[%s217 + $0xc8] sm:$0xff]
        %v271 = vld [vmem:[%s217 + $0xd0] sm:$0xff]
        %v272 = vld [vmem:[%s217 + $0xd8] sm:$0xff]
        %v273 = vld [vmem:[%s217 + $0xe0] sm:$0xff]
        %v274 = vld [vmem:[%s217 + $0xe8] sm:$0xff]
        %v275 = vld [vmem:[%s217 + $0xf0] sm:$0xff]
        %v276 = vld [vmem:[%s217 + $0xf8] sm:$0xff]
        %vm277 = vcmask 523264
        %v278 = vsel %vm277, %v245, 0.0
        %279 = vadd.xlane.f32.xlu0 %v278
        %v280 = vpop.xlane.xlu0 %279
        %v281 = vsel %vm277, %v246, 0.0
        %282 = vadd.xlane.f32.xlu0 %v281
        %v283 = vpop.xlane.xlu0 %282
        %v284 = vsel %vm277, %v247, 0.0
        %285 = vadd.xlane.f32.xlu0 %v284
        %v286 = vpop.xlane.xlu0 %285
        %v287 = vsel %vm277, %v248, 0.0
        %288 = vadd.xlane.f32.xlu0 %v287
        %v289 = vpop.xlane.xlu0 %288
        %v290 = vsel %vm277, %v249, 0.0
        %291 = vadd.xlane.f32.xlu0 %v290
        %v292 = vpop.xlane.xlu0 %291
        %v293 = vsel %vm277, %v250, 0.0
        %294 = vadd.xlane.f32.xlu0 %v293
        %v295 = vpop.xlane.xlu0 %294
        %v296 = vsel %vm277, %v251, 0.0
        %297 = vadd.xlane.f32.xlu0 %v296
        %v298 = vpop.xlane.xlu0 %297
        %v299 = vsel %vm277, %v252, 0.0
        %300 = vadd.xlane.f32.xlu0 %v299
        %v301 = vpop.xlane.xlu0 %300
        %v302 = vsel %vm277, %v253, 0.0
        %303 = vadd.xlane.f32.xlu0 %v302
        %v304 = vpop.xlane.xlu0 %303
        %v305 = vsel %vm277, %v254, 0.0
        %306 = vadd.xlane.f32.xlu0 %v305
        %v307 = vpop.xlane.xlu0 %306
        %v308 = vsel %vm277, %v255, 0.0
        %309 = vadd.xlane.f32.xlu0 %v308
        %v310 = vpop.xlane.xlu0 %309
        %v311 = vsel %vm277, %v256, 0.0
        %312 = vadd.xlane.f32.xlu0 %v311
        %v313 = vpop.xlane.xlu0 %312
        %v314 = vsel %vm277, %v257, 0.0
        %315 = vadd.xlane.f32.xlu0 %v314
        %v316 = vpop.xlane.xlu0 %315
        %v317 = vsel %vm277, %v258, 0.0
        %318 = vadd.xlane.f32.xlu0 %v317
        %v319 = vpop.xlane.xlu0 %318
        %v320 = vsel %vm277, %v259, 0.0
        %321 = vadd.xlane.f32.xlu0 %v320
        %v322 = vpop.xlane.xlu0 %321
        %v323 = vsel %vm277, %v260, 0.0
        %324 = vadd.xlane.f32.xlu0 %v323
        %v325 = vpop.xlane.xlu0 %324
        %v326 = vsel %vm277, %v261, 0.0
        %327 = vadd.xlane.f32.xlu0 %v326
        %v328 = vpop.xlane.xlu0 %327
        %v329 = vsel %vm277, %v262, 0.0
        %330 = vadd.xlane.f32.xlu0 %v329
        %v331 = vpop.xlane.xlu0 %330
        %v332 = vsel %vm277, %v263, 0.0
        %333 = vadd.xlane.f32.xlu0 %v332
        %v334 = vpop.xlane.xlu0 %333
        %v335 = vsel %vm277, %v264, 0.0
        %336 = vadd.xlane.f32.xlu0 %v335
        %v337 = vpop.xlane.xlu0 %336
        %v338 = vsel %vm277, %v265, 0.0
        %339 = vadd.xlane.f32.xlu0 %v338
        %v340 = vpop.xlane.xlu0 %339
        %v341 = vsel %vm277, %v266, 0.0
        %342 = vadd.xlane.f32.xlu0 %v341
        %v343 = vpop.xlane.xlu0 %342
        %v344 = vsel %vm277, %v267, 0.0
        %345 = vadd.xlane.f32.xlu0 %v344
        %v346 = vpop.xlane.xlu0 %345
        %v347 = vsel %vm277, %v268, 0.0
        %348 = vadd.xlane.f32.xlu0 %v347
        %v349 = vpop.xlane.xlu0 %348
        %v350 = vsel %vm277, %v269, 0.0
        %351 = vadd.xlane.f32.xlu0 %v350
        %v352 = vpop.xlane.xlu0 %351
        %v353 = vsel %vm277, %v270, 0.0
        %354 = vadd.xlane.f32.xlu0 %v353
        %v355 = vpop.xlane.xlu0 %354
        %v356 = vsel %vm277, %v271, 0.0
        %357 = vadd.xlane.f32.xlu0 %v356
        %v358 = vpop.xlane.xlu0 %357
        %v359 = vsel %vm277, %v272, 0.0
        %360 = vadd.xlane.f32.xlu0 %v359
        %v361 = vpop.xlane.xlu0 %360
        %v362 = vsel %vm277, %v273, 0.0
        %363 = vadd.xlane.f32.xlu0 %v362
        %v364 = vpop.xlane.xlu0 %363
        %v365 = vsel %vm277, %v274, 0.0
        %366 = vadd.xlane.f32.xlu0 %v365
        %v367 = vpop.xlane.xlu0 %366
        %v368 = vsel %vm277, %v275, 0.0
        %369 = vadd.xlane.f32.xlu0 %v368
        %v370 = vpop.xlane.xlu0 %369
        %v371 = vsel %vm277, %v276, 0.0
        %372 = vadd.xlane.f32.xlu0 %v371
        %v373 = vpop.xlane.xlu0 %372
        %v374 = vld [vmem:[%s1] sm:$0xff]
        %v375 = vld [vmem:[%s1 + $0x8] sm:$0xff]
        %v376 = vld [vmem:[%s1 + $0x10] sm:$0xff]
        %v377 = vld [vmem:[%s1 + $0x18] sm:$0xff]
        %v378 = vld [vmem:[%s2] sm:$0x1]
        %v380 = vlaneseq
        %v381 = vshrl.u32 %v380, 7
        %v382 = vsub.s32 0, %v381
        %v383 = vrot.slane %v378, %v382
        %v417 = vlaneseq
        %v418 = vand.u32 %v417, 127
        %v419 = vlaneseq
        %v420 = vshrl.u32 %v419, 7
        %v421 = vsub.s32 %v418, %v420
        %v422 = vrot.slane %v280, %v421
        %v423 = vadd.s32 %v418, 4294967288
        %v424 = vlaneseq
        %v425 = vshrl.u32 %v424, 7
        %v426 = vsub.s32 %v423, %v425
        %v427 = vrot.slane %v283, %v426
        %vm428 = vcmask 130112
        %v429 = vsel %vm428, %v427, %v422
        %v430 = vadd.s32 %v418, 4294967280
        %v431 = vlaneseq
        %v432 = vshrl.u32 %v431, 7
        %v433 = vsub.s32 %v430, %v432
        %v434 = vrot.slane %v286, %v433
        %vm435 = vcmask 195712
        %v436 = vsel %vm435, %v434, %v429
        %v437 = vadd.s32 %v418, 4294967272
        %v438 = vlaneseq
        %v439 = vshrl.u32 %v438, 7
        %v440 = vsub.s32 %v437, %v439
        %v441 = vrot.slane %v289, %v440
        %vm442 = vcmask 261312
        %v443 = vsel %vm442, %v441, %v436
        %v444 = vlaneseq
        %v445 = vshrl.u32 %v444, 7
        %v446 = vsub.s32 %v418, %v445
        %v447 = vrot.slane %v292, %v446
        %v448 = vlaneseq
        %v449 = vshrl.u32 %v448, 7
        %v450 = vsub.s32 %v423, %v449
        %v451 = vrot.slane %v295, %v450
        %v452 = vsel %vm428, %v451, %v447
        %v453 = vlaneseq
        %v454 = vshrl.u32 %v453, 7
        %v455 = vsub.s32 %v430, %v454
        %v456 = vrot.slane %v298, %v455
        %v457 = vsel %vm435, %v456, %v452
        %v458 = vlaneseq
        %v459 = vshrl.u32 %v458, 7
        %v460 = vsub.s32 %v437, %v459
        %v461 = vrot.slane %v301, %v460
        %v462 = vsel %vm442, %v461, %v457
        %v463 = vlaneseq
        %v464 = vshrl.u32 %v463, 7
        %v465 = vsub.s32 %v418, %v464
        %v466 = vrot.slane %v304, %v465
        %v467 = vlaneseq
        %v468 = vshrl.u32 %v467, 7
        %v469 = vsub.s32 %v423, %v468
        %v470 = vrot.slane %v307, %v469
        %v471 = vsel %vm428, %v470, %v466
        %v472 = vlaneseq
        %v473 = vshrl.u32 %v472, 7
        %v474 = vsub.s32 %v430, %v473
        %v475 = vrot.slane %v310, %v474
        %v476 = vsel %vm435, %v475, %v471
        %v477 = vlaneseq
        %v478 = vshrl.u32 %v477, 7
        %v479 = vsub.s32 %v437, %v478
        %v480 = vrot.slane %v313, %v479
        %v481 = vsel %vm442, %v480, %v476
        %v482 = vlaneseq
        %v483 = vshrl.u32 %v482, 7
        %v484 = vsub.s32 %v418, %v483
        %v485 = vrot.slane %v316, %v484
        %v486 = vlaneseq
        %v487 = vshrl.u32 %v486, 7
        %v488 = vsub.s32 %v423, %v487
        %v489 = vrot.slane %v319, %v488
        %v490 = vsel %vm428, %v489, %v485
        %v491 = vlaneseq
        %v492 = vshrl.u32 %v491, 7
        %v493 = vsub.s32 %v430, %v492
        %v494 = vrot.slane %v322, %v493
        %v495 = vsel %vm435, %v494, %v490
        %v496 = vlaneseq
        %v497 = vshrl.u32 %v496, 7
        %v498 = vsub.s32 %v437, %v497
        %v499 = vrot.slane %v325, %v498
        %v500 = vsel %vm442, %v499, %v495
        %v501 = vlaneseq
        %v502 = vshrl.u32 %v501, 7
        %v503 = vsub.s32 %v418, %v502
        %v504 = vrot.slane %v328, %v503
        %v505 = vlaneseq
        %v506 = vshrl.u32 %v505, 7
        %v507 = vsub.s32 %v423, %v506
        %v508 = vrot.slane %v331, %v507
        %v509 = vsel %vm428, %v508, %v504
        %v510 = vlaneseq
        %v511 = vshrl.u32 %v510, 7
        %v512 = vsub.s32 %v430, %v511
        %v513 = vrot.slane %v334, %v512
        %v514 = vsel %vm435, %v513, %v509
        %v515 = vlaneseq
        %v516 = vshrl.u32 %v515, 7
        %v517 = vsub.s32 %v437, %v516
        %v518 = vrot.slane %v337, %v517
        %v519 = vsel %vm442, %v518, %v514
        %v520 = vlaneseq
        %v521 = vshrl.u32 %v520, 7
        %v522 = vsub.s32 %v418, %v521
        %v523 = vrot.slane %v340, %v522
        %v524 = vlaneseq
        %v525 = vshrl.u32 %v524, 7
        %v526 = vsub.s32 %v423, %v525
        %v527 = vrot.slane %v343, %v526
        %v528 = vsel %vm428, %v527, %v523
        %v529 = vlaneseq
        %v530 = vshrl.u32 %v529, 7
        %v531 = vsub.s32 %v430, %v530
        %v532 = vrot.slane %v346, %v531
        %v533 = vsel %vm435, %v532, %v528
        %v534 = vlaneseq
        %v535 = vshrl.u32 %v534, 7
        %v536 = vsub.s32 %v437, %v535
        %v537 = vrot.slane %v349, %v536
        %v538 = vsel %vm442, %v537, %v533
        %v539 = vlaneseq
        %v540 = vshrl.u32 %v539, 7
        %v541 = vsub.s32 %v418, %v540
        %v542 = vrot.slane %v352, %v541
        %v543 = vlaneseq
        %v544 = vshrl.u32 %v543, 7
        %v545 = vsub.s32 %v423, %v544
        %v546 = vrot.slane %v355, %v545
        %v547 = vsel %vm428, %v546, %v542
        %v548 = vlaneseq
        %v549 = vshrl.u32 %v548, 7
        %v550 = vsub.s32 %v430, %v549
        %v551 = vrot.slane %v358, %v550
        %v552 = vsel %vm435, %v551, %v547
        %v553 = vlaneseq
        %v554 = vshrl.u32 %v553, 7
        %v555 = vsub.s32 %v437, %v554
        %v556 = vrot.slane %v361, %v555
        %v557 = vsel %vm442, %v556, %v552
        %v558 = vlaneseq
        %v559 = vshrl.u32 %v558, 7
        %v560 = vsub.s32 %v418, %v559
        %v561 = vrot.slane %v364, %v560
        %v562 = vlaneseq
        %v563 = vshrl.u32 %v562, 7
        %v564 = vsub.s32 %v423, %v563
        %v565 = vrot.slane %v367, %v564
        %v566 = vsel %vm428, %v565, %v561
        %v567 = vlaneseq
        %v568 = vshrl.u32 %v567, 7
        %v569 = vsub.s32 %v430, %v568
        %v570 = vrot.slane %v370, %v569
        %v571 = vsel %vm435, %v570, %v566
        %v572 = vlaneseq
        %v573 = vshrl.u32 %v572, 7
        %v574 = vsub.s32 %v437, %v573
        %v575 = vrot.slane %v373, %v574
        %v576 = vsel %vm442, %v575, %v571
        %vm577 = vcmask 1041409
        %v578 = vsel %vm577, %v462, %v443
        %vm579 = vcmask 1042434
        %v580 = vsel %vm579, %v481, %v578
        %vm581 = vcmask 1043459
        %v582 = vsel %vm581, %v500, %v580
        %vm583 = vcmask 1044484
        %v584 = vsel %vm583, %v519, %v582
        %vm585 = vcmask 1045509
        %v586 = vsel %vm585, %v538, %v584
        %vm587 = vcmask 1046534
        %v588 = vsel %vm587, %v557, %v586
        %vm589 = vcmask 1047559
        %v590 = vsel %vm589, %v576, %v588
        %vm591 = vcmask 261120
        %v592 = vsel %vm591, %v590, 0
        %594 = vmatprep.subr.mxu0 0.0
        %595 = vmatpush1.msra.mxu0 0.0
        %596 = vmatprep.subr.mxu0 0.0
        %597 = vmatpush1.msra.mxu0 0.0
        %598 = vmatprep.subr.mxu0 0.0
        %599 = vmatpush1.msra.mxu0 0.0
        %600 = vmatprep.subr.mxu0 0.0
        %601 = vmatpush1.msra.mxu0 0.0
        %602 = vmatprep.subr.mxu0 0.0
        %603 = vmatpush1.msra.mxu0 0.0
        %604 = vmatprep.subr.mxu0 0.0
        %605 = vmatpush1.msra.mxu0 0.0
        %606 = vmatprep.subr.mxu0 0.0
        %607 = vmatpush1.msra.mxu0 0.0
        %608 = vmatprep.subr.mxu0 0.0
        %609 = vmatpush1.msra.mxu0 0.0
        %610 = vmatprep.subr.mxu0 0.0
        %611 = vmatpush1.msra.mxu0 0.0
        %612 = vmatprep.subr.mxu0 0.0
        %613 = vmatpush1.msra.mxu0 0.0
        %614 = vmatprep.subr.mxu0 0.0
        %615 = vmatpush1.msra.mxu0 0.0
        %616 = vmatprep.subr.mxu0 0.0
        %617 = vmatpush1.msra.mxu0 0.0
        %618 = vmatprep.subr.mxu0 0.0
        %619 = vmatpush1.msra.mxu0 %v377
        %620 = vmatprep.subr.mxu0 0.0
        %621 = vmatpush1.msra.mxu0 %v376
        %622 = vmatprep.subr.mxu0 0.0
        %623 = vmatpush1.msra.mxu0 %v375
        %624 = vmatprep.subr.mxu0 0.0
        %625 = vmatpush1.msra.mxu0 %v374
        %626 = vmatprep.subr.mxu0 0.0
        %627 = vmatpush2.msra.mxu0 0.0
        %628 = vmatprep.subr.mxu0 0.0
        %629 = vmatpush2.msra.mxu0 0.0
        %630 = vmatprep.subr.mxu0 0.0
        %631 = vmatpush2.msra.mxu0 0.0
        %632 = vmatprep.subr.mxu0 0.0
        %633 = vmatpush2.msra.mxu0 0.0
        %634 = vmatprep.subr.mxu0 0.0
        %635 = vmatpush2.msra.mxu0 0.0
        %636 = vmatprep.subr.mxu0 0.0
        %637 = vmatpush2.msra.mxu0 0.0
        %638 = vmatprep.subr.mxu0 0.0
        %639 = vmatpush2.msra.mxu0 0.0
        %640 = vmatprep.subr.mxu0 0.0
        %641 = vmatpush2.msra.mxu0 0.0
        %642 = vmatprep.subr.mxu0 0.0
        %643 = vmatpush2.msra.mxu0 0.0
        %644 = vmatprep.subr.mxu0 0.0
        %645 = vmatpush2.msra.mxu0 0.0
        %646 = vmatprep.subr.mxu0 0.0
        %647 = vmatpush2.msra.mxu0 0.0
        %648 = vmatprep.subr.mxu0 0.0
        %649 = vmatpush2.msra.mxu0 0.0
        %650 = vmatprep.subr.mxu0 0.0
        %651 = vmatpush2.msra.mxu0 0.0
        %652 = vmatprep.subr.mxu0 0.0
        %653 = vmatpush2.msra.mxu0 0.0
        %654 = vmatprep.subr.mxu0 0.0
        %655 = vmatpush2.msra.mxu0 0.0
        %656 = vmatprep.subr.mxu0 0.0
        %657 = vmatpush2.msra.mxu0 0.0
        %658 = vmatprep.mubr.f32.mxu0 0.0
        %659 = vmatmul.mubr.f32.gmra.mxu0 %v592
        %v660 = vpop.f32.mrf.mxu0
        %v661 = vadd.f32 %v383, %v660
        %v662 = vpop.f32.mrf.mxu0
        %663 = vdwg.mxu0
        %v664 = vmax.f32 %v661, 0.0
        %v665 = vld [vmem:[%s3] sm:$0xff]
        %v666 = vld [vmem:[%s3 + $0x8] sm:$0xff]
        %v667 = vld [vmem:[%s3 + $0x10] sm:$0xff]
        %v668 = vld [vmem:[%s3 + $0x18] sm:$0xff]
        %v669 = vld [vmem:[%s3 + $0x20] sm:$0xff]
        %v670 = vld [vmem:[%s3 + $0x28] sm:$0xff]
        %v671 = vld [vmem:[%s3 + $0x30] sm:$0xff]
        %v672 = vld [vmem:[%s3 + $0x38] sm:$0xff]
        %v673 = vld [vmem:[%s4] sm:$0x1]
        %v675 = vlaneseq
        %v676 = vshrl.u32 %v675, 7
        %v677 = vsub.s32 0, %v676
        %v678 = vrot.slane %v673, %v677
        %v681 = vsel %vm277, %v664, 0
        %683 = vmatprep.subr.mxu0 0.0
        %684 = vmatpush1.msra.mxu0 0.0
        %685 = vmatprep.subr.mxu0 0.0
        %686 = vmatpush1.msra.mxu0 0.0
        %687 = vmatprep.subr.mxu0 0.0
        %688 = vmatpush1.msra.mxu0 0.0
        %689 = vmatprep.subr.mxu0 0.0
        %690 = vmatpush1.msra.mxu0 0.0
        %691 = vmatprep.subr.mxu0 0.0
        %692 = vmatpush1.msra.mxu0 0.0
        %693 = vmatprep.subr.mxu0 0.0
        %694 = vmatpush1.msra.mxu0 0.0
        %695 = vmatprep.subr.mxu0 0.0
        %696 = vmatpush1.msra.mxu0 0.0
        %697 = vmatprep.subr.mxu0 0.0
        %698 = vmatpush1.msra.mxu0 0.0
        %699 = vmatprep.subr.mxu0 0.0
        %700 = vmatpush1.msra.mxu0 %v672
        %701 = vmatprep.subr.mxu0 0.0
        %702 = vmatpush1.msra.mxu0 %v671
        %703 = vmatprep.subr.mxu0 0.0
        %704 = vmatpush1.msra.mxu0 %v670
        %705 = vmatprep.subr.mxu0 0.0
        %706 = vmatpush1.msra.mxu0 %v669
        %707 = vmatprep.subr.mxu0 0.0
        %708 = vmatpush1.msra.mxu0 %v668
        %709 = vmatprep.subr.mxu0 0.0
        %710 = vmatpush1.msra.mxu0 %v667
        %711 = vmatprep.subr.mxu0 0.0
        %712 = vmatpush1.msra.mxu0 %v666
        %713 = vmatprep.subr.mxu0 0.0
        %714 = vmatpush1.msra.mxu0 %v665
        %715 = vmatprep.subr.mxu0 0.0
        %716 = vmatpush2.msra.mxu0 0.0
        %717 = vmatprep.subr.mxu0 0.0
        %718 = vmatpush2.msra.mxu0 0.0
        %719 = vmatprep.subr.mxu0 0.0
        %720 = vmatpush2.msra.mxu0 0.0
        %721 = vmatprep.subr.mxu0 0.0
        %722 = vmatpush2.msra.mxu0 0.0
        %723 = vmatprep.subr.mxu0 0.0
        %724 = vmatpush2.msra.mxu0 0.0
        %725 = vmatprep.subr.mxu0 0.0
        %726 = vmatpush2.msra.mxu0 0.0
        %727 = vmatprep.subr.mxu0 0.0
        %728 = vmatpush2.msra.mxu0 0.0
        %729 = vmatprep.subr.mxu0 0.0
        %730 = vmatpush2.msra.mxu0 0.0
        %731 = vmatprep.subr.mxu0 0.0
        %732 = vmatpush2.msra.mxu0 0.0
        %733 = vmatprep.subr.mxu0 0.0
        %734 = vmatpush2.msra.mxu0 0.0
        %735 = vmatprep.subr.mxu0 0.0
        %736 = vmatpush2.msra.mxu0 0.0
        %737 = vmatprep.subr.mxu0 0.0
        %738 = vmatpush2.msra.mxu0 0.0
        %739 = vmatprep.subr.mxu0 0.0
        %740 = vmatpush2.msra.mxu0 0.0
        %741 = vmatprep.subr.mxu0 0.0
        %742 = vmatpush2.msra.mxu0 0.0
        %743 = vmatprep.subr.mxu0 0.0
        %744 = vmatpush2.msra.mxu0 0.0
        %745 = vmatprep.subr.mxu0 0.0
        %746 = vmatpush2.msra.mxu0 0.0
        %747 = vmatprep.mubr.f32.mxu0 0.0
        %748 = vmatmul.mubr.f32.gmra.mxu0 %v681
        %v749 = vpop.f32.mrf.mxu0
        %v750 = vadd.f32 %v678, %v749
        %v751 = vpop.f32.mrf.mxu0
        %752 = vdwg.mxu0
        %vm753 = vcmask 80896
        %754 = vst.msk [vmem:[%s243] sm:$0xff] %vm753, %v750
        %s755 = sand.u32 %s140, 1
        %s756 = scalar_lea.sflag [#allocation4], %s755
        %s757 = sand.u32 %s140, 1
        %s758 = smul.addr %s757, 8
        %s759 = scalar_lea.vmem [#allocation5], %s758
        // Predicated region
        $region45: #{tpu_custom_call.1} parent=39 // pred_check
          %p760 = pneg %p150
        $region46: #{tpu_custom_call.1} parent=39 // pred_check_branch
          %762 = sbr.rel (%p760) target = $region48
        $region47: #{tpu_custom_call.1} parent=39 // pred_region
          %s764 = ssub.s32 128, 128
          %765 = vsyncadd %s756, %s764
          %s766 = smul.addr %s22, 128
          %s767 = scalar_lea.hbm %s5, %s766
          %s769 = sshll.u32 %s759, 4
          %s770 = int_to_ptr.vmem [resolvable:$true] %s769
          %772 = dma.vmem_to_hbm [thread:$0]  %s770, 128, %s767, %s756
        $region48: #{tpu_custom_call.1} parent=39 // pred_fallthru
          _
      $region40: #{tpu_custom_call.1} parent=5 // pred_fallthru
        _
      %p773 = scmp.le.s32.totalorder 2, %s17
      // Predicated region
      $region49: #{tpu_custom_call.1} parent=5 // pred_check
        %p774 = pneg %p773
      $region50: #{tpu_custom_call.1} parent=5 // pred_check_branch
        %776 = sbr.rel (%p774) target = $region52
      $region51: #{tpu_custom_call.1} parent=5 // pred_region
        %s777 = ssub.s32 %s17, 2
        // Predicated region
        $region53: #{tpu_custom_call.1} parent=51 // pred_check
          %p778 = pneg %p156
        $region54: #{tpu_custom_call.1} parent=51 // pred_check_branch
          %780 = sbr.rel (%p778) target = $region56
        $region55: #{tpu_custom_call.1} parent=51 // pred_region
          %s781 = sand.u32 %s141, 1
          %s782 = scalar_lea.sflag [#allocation4], %s781
          %s783 = sand.u32 %s141, 1
          %s784 = smul.addr %s783, 8
          %s785 = scalar_lea.vmem [#allocation5], %s784
          %786 = dma.done %s782, 128
        $region56: #{tpu_custom_call.1} parent=51 // pred_fallthru
          _
      $region52: #{tpu_custom_call.1} parent=5 // pred_fallthru
        _
    $region6: #{tpu_custom_call.1} parent=1 // loop_footer
      %s21 = sadd.s32 1, %s17
    $region7: #{tpu_custom_call.1} parent=1 // loop_footer_branch
      %16 = sbr.rel target = $region3
    $region8: #{tpu_custom_call.1} parent=1 // loop_exit
      _
    %787 = vsyncpa [#allocation3], 1
    %s788 = scalar_lea.sflag [#allocation3], 1
    %789 = vsyncpa %s788, 1
    %790 = vsyncpa [#allocation4], 1
    %s791 = scalar_lea.sflag [#allocation4], 1
    %792 = vsyncpa %s791, 1

</llo_original>
